<compile_context>
chip_gen: v5e
topology: v5e:2x2
jax: 0.10.0
libtpu: 0.0.40
codegen_flags: <defaults>
</compile_context>

<pallas_src>
import math

import jax
import jax.numpy as jnp
from jax.experimental import pallas as pl
from jax.experimental.pallas import tpu as pltpu


# ----------------------------------------------------------------------------
# Pallas kernel: fused MLP -> (Fourier linear ∘ inverse Fourier transform)
# ----------------------------------------------------------------------------
def _classifier_kernel(x_ref, w0_ref, b0_ref, w1_ref, b1_ref, wfg_ref, out_ref):
    # hidden block 1: Linear + ReLU   (bf16 operands, f32 accumulate, f32 bias/ReLU)
    h = jnp.dot(x_ref[...], w0_ref[...], preferred_element_type=jnp.float32)
    h = jnp.maximum(h + b0_ref[...], 0.0)

    # hidden block 2: Linear + ReLU
    h = jnp.dot(h.astype(w1_ref.dtype), w1_ref[...], preferred_element_type=jnp.float32)
    h = jnp.maximum(h + b1_ref[...], 0.0)

    # fused (final Linear -> Fourier coeffs) @ (inverse Fourier basis), pre-multiplied offline.
    # wfg is zero-padded to 128 lanes so this store is a full, unmasked vst.
    out_ref[...] = jnp.dot(h.astype(wfg_ref.dtype), wfg_ref[...],
                           preferred_element_type=jnp.float32)


def _round_up(x: int, m: int) -> int:
    return (x + m - 1) // m * m


def view_pair_classifier_forward(x, w0, b0, w1, b1, wf, ift):
    """x: (B, F0) f32. Returns (B, G) f32 logits."""
    B, F0 = x.shape
    F1 = w0.shape[1]
    F2 = w1.shape[1]
    D, G = ift.shape

    # --- offline algebra -----------------------------------------------------
    # Fold the final Fourier linear and the IFT into one (F2, G) matrix, then pad the
    # lane axis to 128 so the output tile is lane-dense.
    wf_ift = (wf.astype(jnp.float32) @ ift.astype(jnp.float32))          # (F2, G)
    GP = _round_up(max(G, 1), 128)
    wfg = jnp.zeros((F2, GP), jnp.float32).at[:, :G].set(wf_ift)

    # --- batch tiling ---------------------------------------------------------
    TB = min(128, _round_up(B, 8))          # multiple of 8 sublanes, capped at 128 rows
    B_pad = _round_up(B, TB)
    if B_pad != B:
        x = jnp.concatenate([x, jnp.zeros((B_pad - B, F0), x.dtype)], axis=0)
    grid = (B_pad // TB,)

    # --- dtypes: bf16 operands into the MXU, f32 biases / accumulation --------
    xb = x.astype(jnp.bfloat16)
    w0b = w0.astype(jnp.bfloat16)
    w1b = w1.astype(jnp.bfloat16)
    wfgb = wfg.astype(jnp.bfloat16)
    b0f = b0.astype(jnp.float32)
    b1f = b1.astype(jnp.float32)

    resident = lambda shape: pl.BlockSpec(shape, lambda i: (0, 0))       # stays in VMEM

    out = pl.pallas_call(
        _classifier_kernel,
        grid=grid,
        in_specs=[
            pl.BlockSpec((TB, F0), lambda i: (i, 0)),   # x: tiled over batch
            resident((F0, F1)),
            resident((1, F1)),
            resident((F1, F2)),
            resident((1, F2)),
            resident((F2, GP)),
        ],
        out_specs=pl.BlockSpec((TB, GP), lambda i: (i, 0)),
        out_shape=jax.ShapeDtypeStruct((B_pad, GP), jnp.float32),
        compiler_params=pltpu.CompilerParams(
            dimension_semantics=("parallel",),          # v7x: shard batch over 2 TCs
            vmem_limit_bytes=32 << 20,                  # safe on v7x's 64 MiB VMEM
        ),
    )(xb, w0b, b0f, w1b, b1f, wfgb)

    return out[:B, :G]


# ----------------------------------------------------------------------------
# Deterministic parameter construction (synthetic; shapes follow __init__)
# ----------------------------------------------------------------------------
def make_ift_matrix(max_freq: int, n_grid: int) -> jnp.ndarray:
    """Inverse Fourier transform basis for an SO(2)_z band-limited signal sampled on a
    regular grid of n_grid rotations.  Rows: [1, cos t, sin t, cos 2t, sin 2t, ...].
    # TODO(synk): escnn normalizes each irrep block by sqrt(dim); standard Fourier basis used here.
    """
    D = 2 * max_freq + 1
    thetas = jnp.arange(n_grid, dtype=jnp.float32) * (2.0 * math.pi / n_grid)
    rows = [jnp.ones((n_grid,), jnp.float32)]
    for ell in range(1, max_freq + 1):
        rows.append(math.sqrt(2.0) * jnp.cos(ell * thetas))
        rows.append(math.sqrt(2.0) * jnp.sin(ell * thetas))
    ift = jnp.stack(rows, axis=0)          # (D, G)
    assert ift.shape == (D, n_grid)
    return ift


def _reference_forward(x, w0, b0, w1, b1, wf, ift):
    """Plain-JAX reference replicating the kernel's bf16/f32 numerics."""
    wf_ift = (wf.astype(jnp.float32) @ ift.astype(jnp.float32)).astype(jnp.bfloat16)
    h = jnp.dot(x.astype(jnp.bfloat16), w0.astype(jnp.bfloat16),
                preferred_element_type=jnp.float32)
    h = jnp.maximum(h + b0, 0.0)
    h = jnp.dot(h.astype(jnp.bfloat16), w1.astype(jnp.bfloat16),
                preferred_element_type=jnp.float32)
    h = jnp.maximum(h + b1, 0.0)
    return jnp.dot(h.astype(jnp.bfloat16), wf_ift, preferred_element_type=jnp.float32)


if __name__ == "__main__":
    # Small shapes consistent with the module's classifier head.
    F0, F1, F2 = 64, 64, 32        # fiber sizes of layer_types[0..2]
    logits_max_freq = 2
    D = 2 * logits_max_freq + 1    # Fourier coefficients (1 channel, SO(2)_z irreps 0..2)
    G = 8                          # number of group elements in logits_grid (views V)

    key = jax.random.PRNGKey(0)
    k0, kb0, k1, kb1, kf, kx1, kx2 = jax.random.split(key, 7)

    w0 = jax.random.normal(k0, (F0, F1), dtype=jnp.float32) / math.sqrt(F0)
    b0 = jax.random.normal(kb0, (1, F1), dtype=jnp.float32) * 0.1
    w1 = jax.random.normal(k1, (F1, F2), dtype=jnp.float32) / math.sqrt(F1)
    b1 = jax.random.normal(kb1, (1, F2), dtype=jnp.float32) * 0.1
    wf = jax.random.normal(kf, (F2, D), dtype=jnp.float32) / math.sqrt(F2)
    ift = make_ift_matrix(logits_max_freq, G)   # (D, G)

    # Case 1: tiny batch (B=2) -> single padded tile.
    x = jax.random.normal(kx1, (2, F0), dtype=jnp.float32)
    logits = view_pair_classifier_forward(x, w0, b0, w1, b1, wf, ift)
    jax.block_until_ready(logits)
    ref = _reference_forward(x, w0, b0, w1, b1, wf, ift)
    assert logits.shape == (2, G)
    assert jnp.allclose(logits, ref, atol=2e-2, rtol=2e-2)

    # Case 2: batch that exercises the tiled grid (200 -> 2 tiles of 128 with padding).
    x2 = jax.random.normal(kx2, (200, F0), dtype=jnp.float32)
    logits2 = view_pair_classifier_forward(x2, w0, b0, w1, b1, wf, ift)
    jax.block_until_ready(logits2)
    ref2 = _reference_forward(x2, w0, b0, w1, b1, wf, ift)
    assert logits2.shape == (200, G)
    assert jnp.allclose(logits2, ref2, atol=2e-2, rtol=2e-2)

    print("KERNEL_OK")
</pallas_src>

<mosaic_0001>
module attributes {stable_mosaic.version = 11 : i64} {
  func.func @_classifier_kernel(%arg0: i32, %arg1: memref<8x64xbf16, #tpu.memory_space<vmem>>, %arg2: memref<64x64xbf16, #tpu.memory_space<vmem>>, %arg3: memref<1x64xf32, #tpu.memory_space<vmem>>, %arg4: memref<64x32xbf16, #tpu.memory_space<vmem>>, %arg5: memref<1x32xf32, #tpu.memory_space<vmem>>, %arg6: memref<32x128xbf16, #tpu.memory_space<vmem>>, %arg7: memref<8x128xf32, #tpu.memory_space<vmem>>) attributes {dimension_semantics = [#tpu.dimension_semantics<parallel>], iteration_bounds = array<i64: 1>, scalar_prefetch = 0 : i64, scratch_operands = 0 : i64, tpu.core_type = #tpu.core_type<tc>, window_params = [{transform_indices = @transform_0, window_bounds = array<i64: 8, 64>}, {pipeline_mode = #tpu.pipeline_mode<synchronous>, transform_indices = @transform_1, window_bounds = array<i64: 64, 64>}, {pipeline_mode = #tpu.pipeline_mode<synchronous>, transform_indices = @transform_2, window_bounds = array<i64: 1, 64>}, {pipeline_mode = #tpu.pipeline_mode<synchronous>, transform_indices = @transform_3, window_bounds = array<i64: 64, 32>}, {pipeline_mode = #tpu.pipeline_mode<synchronous>, transform_indices = @transform_4, window_bounds = array<i64: 1, 32>}, {pipeline_mode = #tpu.pipeline_mode<synchronous>, transform_indices = @transform_5, window_bounds = array<i64: 32, 128>}, {transform_indices = @transform_6, window_bounds = array<i64: 8, 128>}]} {
    %c0 = arith.constant 0 : index
    %c0_0 = arith.constant 0 : index
    %0 = vector.load %arg1[%c0, %c0_0] : memref<8x64xbf16, #tpu.memory_space<vmem>>, vector<8x64xbf16>
    %c0_1 = arith.constant 0 : index
    %c0_2 = arith.constant 0 : index
    %1 = vector.load %arg2[%c0_1, %c0_2] : memref<64x64xbf16, #tpu.memory_space<vmem>>, vector<64x64xbf16>
    %cst = arith.constant dense<0.000000e+00> : vector<8x64xf32>
    %2 = tpu.matmul %0, %1, %cst {dimension_numbers = #tpu.dot_dimension_numbers<[1], [0], [0], [1], [0, 0, 1, 1], [], []>} : vector<8x64xbf16>, vector<64x64xbf16>, vector<8x64xf32> -> vector<8x64xf32>
    %c0_3 = arith.constant 0 : index
    %c0_4 = arith.constant 0 : index
    %3 = vector.load %arg3[%c0_3, %c0_4] : memref<1x64xf32, #tpu.memory_space<vmem>>, vector<1x64xf32>
    %4 = vector.broadcast %3 : vector<1x64xf32> to vector<8x64xf32>
    %5 = arith.addf %2, %4 : vector<8x64xf32>
    %cst_5 = arith.constant 0.000000e+00 : f32
    %6 = vector.broadcast %cst_5 : f32 to vector<8x64xf32>
    %7 = arith.maximumf %5, %6 : vector<8x64xf32>
    %8 = arith.truncf %7 : vector<8x64xf32> to vector<8x64xbf16>
    %c0_6 = arith.constant 0 : index
    %c0_7 = arith.constant 0 : index
    %9 = vector.load %arg4[%c0_6, %c0_7] : memref<64x32xbf16, #tpu.memory_space<vmem>>, vector<64x32xbf16>
    %cst_8 = arith.constant dense<0.000000e+00> : vector<8x32xf32>
    %10 = tpu.matmul %8, %9, %cst_8 {dimension_numbers = #tpu.dot_dimension_numbers<[1], [0], [0], [1], [0, 0, 1, 1], [], []>} : vector<8x64xbf16>, vector<64x32xbf16>, vector<8x32xf32> -> vector<8x32xf32>
    %c0_9 = arith.constant 0 : index
    %c0_10 = arith.constant 0 : index
    %11 = vector.load %arg5[%c0_9, %c0_10] : memref<1x32xf32, #tpu.memory_space<vmem>>, vector<1x32xf32>
    %12 = vector.broadcast %11 : vector<1x32xf32> to vector<8x32xf32>
    %13 = arith.addf %10, %12 : vector<8x32xf32>
    %cst_11 = arith.constant 0.000000e+00 : f32
    %14 = vector.broadcast %cst_11 : f32 to vector<8x32xf32>
    %15 = arith.maximumf %13, %14 : vector<8x32xf32>
    %16 = arith.truncf %15 : vector<8x32xf32> to vector<8x32xbf16>
    %c0_12 = arith.constant 0 : index
    %c0_13 = arith.constant 0 : index
    %17 = vector.load %arg6[%c0_12, %c0_13] : memref<32x128xbf16, #tpu.memory_space<vmem>>, vector<32x128xbf16>
    %cst_14 = arith.constant dense<0.000000e+00> : vector<8x128xf32>
    %18 = tpu.matmul %16, %17, %cst_14 {dimension_numbers = #tpu.dot_dimension_numbers<[1], [0], [0], [1], [0, 0, 1, 1], [], []>} : vector<8x32xbf16>, vector<32x128xbf16>, vector<8x128xf32> -> vector<8x128xf32>
    %c0_15 = arith.constant 0 : index
    %c0_16 = arith.constant 0 : index
    %19 = vector.load %arg7[%c0_15, %c0_16] : memref<8x128xf32, #tpu.memory_space<vmem>>, vector<8x128xf32>
    tpu.vector_store %arg7[%c0_15, %c0_16], %18 {strides = array<i32>} : memref<8x128xf32, #tpu.memory_space<vmem>>, vector<8x128xf32>,
    return
  }
  func.func @transform_0(%arg0: i32) -> (i32, i32) {
    %c0_i32 = arith.constant 0 : i32
    %c0_i32_0 = arith.constant 0 : i32
    return %arg0, %c0_i32 : i32, i32
  }
  func.func @transform_1(%arg0: i32) -> (i32, i32) {
    %c0_i32 = arith.constant 0 : i32
    %c0_i32_0 = arith.constant 0 : i32
    %c0_i32_1 = arith.constant 0 : i32
    return %c0_i32, %c0_i32_0 : i32, i32
  }
  func.func @transform_2(%arg0: i32) -> (i32, i32) {
    %c0_i32 = arith.constant 0 : i32
    %c0_i32_0 = arith.constant 0 : i32
    %c0_i32_1 = arith.constant 0 : i32
    return %c0_i32, %c0_i32_0 : i32, i32
  }
  func.func @transform_3(%arg0: i32) -> (i32, i32) {
    %c0_i32 = arith.constant 0 : i32
    %c0_i32_0 = arith.constant 0 : i32
    %c0_i32_1 = arith.constant 0 : i32
    return %c0_i32, %c0_i32_0 : i32, i32
  }
  func.func @transform_4(%arg0: i32) -> (i32, i32) {
    %c0_i32 = arith.constant 0 : i32
    %c0_i32_0 = arith.constant 0 : i32
    %c0_i32_1 = arith.constant 0 : i32
    return %c0_i32, %c0_i32_0 : i32, i32
  }
  func.func @transform_5(%arg0: i32) -> (i32, i32) {
    %c0_i32 = arith.constant 0 : i32
    %c0_i32_0 = arith.constant 0 : i32
    %c0_i32_1 = arith.constant 0 : i32
    return %c0_i32, %c0_i32_0 : i32, i32
  }
  func.func @transform_6(%arg0: i32) -> (i32, i32) {
    %c0_i32 = arith.constant 0 : i32
    %c0_i32_0 = arith.constant 0 : i32
    return %arg0, %c0_i32 : i32, i32
  }
}

</mosaic_0001>

<llo_original>
// kernel: tpu_custom_call.1
$region0: #{tpu_custom_call.1}
  #allocation0 [shape = 'u32[]', space=smem, size = 0x4, offset = 0x4, fixed_abs, tag = 'smem constant byte address 0x4 - core index']
  #allocation1 [shape = 'u32[72,128]{1,0:T(1,128)}', space=vmem, size = 0x9000, scoped, tag = 'internal scratch']
  %s0 = inlined_call_operand.hbm [shape: bf16[8,64], index: 0, kind: input, shape index: {}]
  %s1 = inlined_call_operand.vmem [shape: bf16[64,64], index: 1, kind: input, shape index: {}]
  %s2 = inlined_call_operand.vmem [shape: f32[1,64], index: 2, kind: input, shape index: {}]
  %s3 = inlined_call_operand.vmem [shape: bf16[64,32], index: 3, kind: input, shape index: {}]
  %s4 = inlined_call_operand.vmem [shape: f32[1,32], index: 4, kind: input, shape index: {}]
  %s5 = inlined_call_operand.vmem [shape: bf16[32,128], index: 5, kind: input, shape index: {}]
  %s6 = inlined_call_operand.hbm [shape: f32[8,128], index: 6, kind: output, shape index: {}]
  %s7 = sld [smem:[#allocation0]]
  $region38: #{tpu_custom_call.1} parent=0
    _
  %s9 = ssub.s32 1, %s7
  %s10 = scalar_select 0, %s9, %s7
  $region1: #{tpu_custom_call.1} parent=0
    #allocation2 [shape = 'u8[2048]{0}', space=vmem, size = 0x800, scoped, tag = 'input window, operand 0, single buffered']
    #allocation3 [shape = 's32[1]{0}', space=sflag, size = 0x4, scoped, tag = 'scoped memory for tpu_custom_call.1']
    #allocation4 [shape = 's32[1]{0}', space=sflag, size = 0x4, scoped, tag = 'scoped memory for tpu_custom_call.1']
    #allocation5 [shape = 'u8[4096]{0}', space=vmem, size = 0x1000, scoped, tag = 'output window, operand 0, single buffered']
    %11 = vsyncpa [#allocation3], 0
    %12 = vsyncpa [#allocation4], 0
    // Predicated region
    $region2: #{tpu_custom_call.1} parent=1 // pred_check
      _
    $region3: #{tpu_custom_call.1} parent=1 // pred_check_branch
      %14 = sbr.rel (0) target = $region5
    $region4: #{tpu_custom_call.1} parent=1 // pred_region
      %16 = vsyncadd [#allocation3], 0
      %s18 = sshll.u32 %s0, 4
      %s19 = int_to_ptr.hbm [resolvable:$true] %s18
      %s20 = sshll.u32 [#allocation2], 4
      %s21 = int_to_ptr.vmem [resolvable:$true] %s20
      %23 = dma.hbm_to_vmem [thread:$0]  %s19, 64, %s21, [#allocation3]
    $region5: #{tpu_custom_call.1} parent=1 // pred_fallthru
      _
    // Predicated region
    $region6: #{tpu_custom_call.1} parent=1 // pred_check
      _
    $region7: #{tpu_custom_call.1} parent=1 // pred_check_branch
      %25 = sbr.rel (0) target = $region9
    $region8: #{tpu_custom_call.1} parent=1 // pred_region
      _
    $region9: #{tpu_custom_call.1} parent=1 // pred_fallthru
      _
    // Predicated region
    $region10: #{tpu_custom_call.1} parent=1 // pred_check
      _
    $region11: #{tpu_custom_call.1} parent=1 // pred_check_branch
      %27 = sbr.rel (0) target = $region13
    $region12: #{tpu_custom_call.1} parent=1 // pred_region
      _
    $region13: #{tpu_custom_call.1} parent=1 // pred_fallthru
      _
    // Predicated region
    $region14: #{tpu_custom_call.1} parent=1 // pred_check
      _
    $region15: #{tpu_custom_call.1} parent=1 // pred_check_branch
      %29 = sbr.rel (0) target = $region17
    $region16: #{tpu_custom_call.1} parent=1 // pred_region
      _
    $region17: #{tpu_custom_call.1} parent=1 // pred_fallthru
      _
    // Predicated region
    $region18: #{tpu_custom_call.1} parent=1 // pred_check
      _
    $region19: #{tpu_custom_call.1} parent=1 // pred_check_branch
      %31 = sbr.rel (0) target = $region21
    $region20: #{tpu_custom_call.1} parent=1 // pred_region
      _
    $region21: #{tpu_custom_call.1} parent=1 // pred_fallthru
      _
    // Predicated region
    $region22: #{tpu_custom_call.1} parent=1 // pred_check
      _
    $region23: #{tpu_custom_call.1} parent=1 // pred_check_branch
      %33 = sbr.rel (0) target = $region25
    $region24: #{tpu_custom_call.1} parent=1 // pred_region
      _
    $region25: #{tpu_custom_call.1} parent=1 // pred_fallthru
      _
    // Predicated region
    $region26: #{tpu_custom_call.1} parent=1 // pred_check
      _
    $region27: #{tpu_custom_call.1} parent=1 // pred_check_branch
      %35 = sbr.rel (0) target = $region29
    $region28: #{tpu_custom_call.1} parent=1 // pred_region
      %37 = dma.done [#allocation3], 64
    $region29: #{tpu_custom_call.1} parent=1 // pred_fallthru
      _
    %v39 = vld [vmem:[#allocation2] sm:$0xf]
    %v40 = vld [vmem:[%s1] sm:$0xf]
    %v41 = vld [vmem:[%s1 + $0x4] sm:$0xf]
    %v42 = vld [vmem:[%s1 + $0x8] sm:$0xf]
    %v43 = vld [vmem:[%s1 + $0xc] sm:$0xf]
    %v44 = vld [vmem:[%s1 + $0x10] sm:$0xf]
    %v45 = vld [vmem:[%s1 + $0x14] sm:$0xf]
    %v46 = vld [vmem:[%s1 + $0x18] sm:$0xf]
    %v47 = vld [vmem:[%s1 + $0x1c] sm:$0xf]
    %v48 = vld [vmem:[%s2] sm:$0x1]
    %v50 = vperm.slane %v48, 0
    %v60 = vunpack.c.l.b16 %v40
    %v61 = vunpack.c.l.b16 %v41
    %v62 = vunpack.c.l.b16 %v42
    %v63 = vunpack.c.l.b16 %v43
    %v64 = vunpack.c.l.b16 %v44
    %v65 = vunpack.c.l.b16 %v45
    %v66 = vunpack.c.l.b16 %v46
    %v67 = vunpack.c.l.b16 %v47
    %v68 = vpack.c.b16 %v61, %v60
    %v69 = vpack.c.b16 %v63, %v62
    %v70 = vpack.c.b16 %v65, %v64
    %v71 = vpack.c.b16 %v67, %v66
    %vm76 = vcmask 523264
    %v78 = vsel %vm76, %v39, 0
    %80 = vmatpush.bf16.msra.mxu0 0
    %81 = vmatpush.bf16.msra.mxu0 0
    %82 = vmatpush.bf16.msra.mxu0 0
    %83 = vmatpush.bf16.msra.mxu0 0
    %84 = vmatpush.bf16.msra.mxu0 %v71
    %85 = vmatpush.bf16.msra.mxu0 %v70
    %86 = vmatpush.bf16.msra.mxu0 %v69
    %87 = vmatpush.bf16.msra.mxu0 %v68
    %88 = vmatmul.bf16.gmra.mxu0 %v78
    %v89 = vpop.f32.mrf.mxu0
    %v90 = vadd.f32 %v50, %v89
    %v91 = vpop.f32.mrf.mxu0
    %92 = vdwg.mxu0
    %v93 = vmax.f32 %v90, 0.0
    %v94 = vpack.c.bf16 %v93, %v93
    %v95 = vld [vmem:[%s3] sm:$0xf]
    %v96 = vld [vmem:[%s3 + $0x4] sm:$0xf]
    %v97 = vld [vmem:[%s3 + $0x8] sm:$0xf]
    %v98 = vld [vmem:[%s3 + $0xc] sm:$0xf]
    %v99 = vld [vmem:[%s3 + $0x10] sm:$0xf]
    %v100 = vld [vmem:[%s3 + $0x14] sm:$0xf]
    %v101 = vld [vmem:[%s3 + $0x18] sm:$0xf]
    %v102 = vld [vmem:[%s3 + $0x1c] sm:$0xf]
    %v103 = vld [vmem:[%s4] sm:$0x1]
    %v105 = vperm.slane %v103, 0
    %v115 = vunpack.c.l.b16 %v95
    %v116 = vunpack.c.l.b16 %v96
    %v117 = vunpack.c.l.b16 %v97
    %v118 = vunpack.c.l.b16 %v98
    %v119 = vunpack.c.l.b16 %v99
    %v120 = vunpack.c.l.b16 %v100
    %v121 = vunpack.c.l.b16 %v101
    %v122 = vunpack.c.l.b16 %v102
    %v123 = vpack.c.b16 %v116, %v115
    %v124 = vpack.c.b16 %v118, %v117
    %v125 = vpack.c.b16 %v120, %v119
    %v126 = vpack.c.b16 %v122, %v121
    %v132 = vsel %vm76, %v94, 0
    %134 = vmatpush.bf16.msra.mxu0 0
    %135 = vmatpush.bf16.msra.mxu0 0
    %136 = vmatpush.bf16.msra.mxu0 0
    %137 = vmatpush.bf16.msra.mxu0 0
    %138 = vmatpush.bf16.msra.mxu0 %v126
    %139 = vmatpush.bf16.msra.mxu0 %v125
    %140 = vmatpush.bf16.msra.mxu0 %v124
    %141 = vmatpush.bf16.msra.mxu0 %v123
    %142 = vmatmul.bf16.gmra.mxu0 %v132
    %v143 = vpop.f32.mrf.mxu0
    %v144 = vadd.f32 %v105, %v143
    %v145 = vpop.f32.mrf.mxu0
    %146 = vdwg.mxu0
    %v147 = vmax.f32 %v144, 0.0
    %v148 = vpack.c.bf16 %v147, %v147
    %v149 = vld [vmem:[%s5] sm:$0xf]
    %v150 = vld [vmem:[%s5 + $0x4] sm:$0xf]
    %v151 = vld [vmem:[%s5 + $0x8] sm:$0xf]
    %v152 = vld [vmem:[%s5 + $0xc] sm:$0xf]
    %v157 = vunpack.c.l.b16 %v149
    %v158 = vunpack.c.l.b16 %v150
    %v159 = vunpack.c.l.b16 %v151
    %v160 = vunpack.c.l.b16 %v152
    %v161 = vpack.c.b16 %v158, %v157
    %v162 = vpack.c.b16 %v160, %v159
    %vm165 = vcmask 261120
    %v167 = vsel %vm165, %v148, 0
    %169 = vmatpush.bf16.msra.mxu0 0
    %170 = vmatpush.bf16.msra.mxu0 0
    %171 = vmatpush.bf16.msra.mxu0 0
    %172 = vmatpush.bf16.msra.mxu0 0
    %173 = vmatpush.bf16.msra.mxu0 0
    %174 = vmatpush.bf16.msra.mxu0 0
    %175 = vmatpush.bf16.msra.mxu0 %v162
    %176 = vmatpush.bf16.msra.mxu0 %v161
    %177 = vmatmul.bf16.gmra.mxu0 %v167
    %v178 = vpop.f32.mrf.mxu0
    %v179 = vadd.f32 0.0, %v178
    %v180 = vpop.f32.mrf.mxu0
    %181 = vdwg.mxu0
    %182 = vst [vmem:[#allocation5] sm:$0xff] %v179
    // Predicated region
    $region30: #{tpu_custom_call.1} parent=1 // pred_check
      _
    $region31: #{tpu_custom_call.1} parent=1 // pred_check_branch
      %184 = sbr.rel (0) target = $region33
    $region32: #{tpu_custom_call.1} parent=1 // pred_region
      %186 = vsyncadd [#allocation4], 0
      %s188 = sshll.u32 [#allocation5], 4
      %s189 = int_to_ptr.vmem [resolvable:$true] %s188
      %s190 = sshll.u32 %s6, 4
      %s191 = int_to_ptr.hbm [resolvable:$true] %s190
      %193 = dma.vmem_to_hbm [thread:$0]  %s189, 128, %s191, [#allocation4]
    $region33: #{tpu_custom_call.1} parent=1 // pred_fallthru
      _
    // Predicated region
    $region34: #{tpu_custom_call.1} parent=1 // pred_check
      _
    $region35: #{tpu_custom_call.1} parent=1 // pred_check_branch
      %195 = sbr.rel (0) target = $region37
    $region36: #{tpu_custom_call.1} parent=1 // pred_region
      %197 = dma.done [#allocation4], 128
    $region37: #{tpu_custom_call.1} parent=1 // pred_fallthru
      _
    %198 = vsyncpa [#allocation3], 1
    %199 = vsyncpa [#allocation4], 1

</llo_original>
